<compile_context>
chip_gen: v6e
topology: v6e:2x2x1
jax: 0.10.0
libtpu: 0.0.40
codegen_flags: <defaults>
</compile_context>

<pallas_src>
import jax
import jax.numpy as jnp
from jax.experimental import pallas as pl
from jax.experimental.pallas import tpu as pltpu

IN_FEATURES = 6
H1 = 32
H2 = 16
OUT_FEATURES = 6

# Packed parameter slab layout (one [64, 128] f32 slab = 32 KiB, VMEM-resident).
PARAM_ROWS = 64
PARAM_COLS = 128
W1_ROW = 0    # rows 0:6   cols 0:32   -> W1^T  [in=6,  out=32]
W2_ROW = 8    # rows 8:40  cols 0:16   -> W2^T  [in=32, out=16]
W3_ROW = 40   # rows 40:56 cols 0:6    -> W3^T  [in=16, out=6]
B1_ROW = 56   # row 56     cols 0:32   -> b1
B2_ROW = 57   # row 57     cols 0:16   -> b2
B3_ROW = 58   # row 58     cols 0:6    -> b3

MAX_BATCH_TILE = 2048   # rows (batch elements) per grid step


def mlp_kernel(p_ref, x_ref, o_ref):
    # x_ref: [BT, 6] (natural layout: batch on sublanes, features on lanes).
    x = x_ref[...]

    # fc1 + relu : [BT, 6] @ [6, 32] + [1, 32]
    w1t = p_ref[W1_ROW:W1_ROW + IN_FEATURES, 0:H1]
    b1 = p_ref[B1_ROW:B1_ROW + 1, 0:H1]
    h = jnp.maximum(jnp.dot(x, w1t, preferred_element_type=jnp.float32) + b1, 0.0)

    # fc2 + relu : [BT, 32] @ [32, 16] + [1, 16]
    w2t = p_ref[W2_ROW:W2_ROW + H1, 0:H2]
    b2 = p_ref[B2_ROW:B2_ROW + 1, 0:H2]
    h = jnp.maximum(jnp.dot(h, w2t, preferred_element_type=jnp.float32) + b2, 0.0)

    # fc3 + relu : [BT, 16] @ [16, 6] + [1, 6]
    w3t = p_ref[W3_ROW:W3_ROW + H2, 0:OUT_FEATURES]
    b3 = p_ref[B3_ROW:B3_ROW + 1, 0:OUT_FEATURES]
    h = jnp.maximum(jnp.dot(h, w3t, preferred_element_type=jnp.float32) + b3, 0.0)

    o_ref[...] = h.astype(o_ref.dtype)


def pack_params(params):
    """Pack (w1,b1,w2,b2,w3,b3) [PyTorch layout: w=[out,in], b=[out]] into one slab,
    storing weights transposed ([in,out]) so the kernel needs no runtime transposes."""
    w1, b1, w2, b2, w3, b3 = params
    p = jnp.zeros((PARAM_ROWS, PARAM_COLS), jnp.float32)
    p = p.at[W1_ROW:W1_ROW + IN_FEATURES, 0:H1].set(w1.T.astype(jnp.float32))
    p = p.at[W2_ROW:W2_ROW + H1, 0:H2].set(w2.T.astype(jnp.float32))
    p = p.at[W3_ROW:W3_ROW + H2, 0:OUT_FEATURES].set(w3.T.astype(jnp.float32))
    p = p.at[B1_ROW, 0:H1].set(b1.astype(jnp.float32))
    p = p.at[B2_ROW, 0:H2].set(b2.astype(jnp.float32))
    p = p.at[B3_ROW, 0:OUT_FEATURES].set(b3.astype(jnp.float32))
    return p


def _choose_batch_tile(batch):
    """Large tiles to amortize per-step overhead; keep >=2 grid steps for big
    batches (v7x megacore); small batches get one exact-sized tile."""
    if batch >= 2 * MAX_BATCH_TILE:
        return MAX_BATCH_TILE
    tile = ((pl.cdiv(batch, 2) + 255) // 256) * 256   # ~half batch, mult of 256
    tile = max(256, min(tile, MAX_BATCH_TILE))
    if tile >= batch:
        # Single tile exactly covering the array (block dim == full array dim
        # is always a legal block shape) -> no padded rows at all.
        return batch
    return tile


def mlp_forward(x, packed_params):
    batch = x.shape[0]
    bt = _choose_batch_tile(batch)
    num_tiles = pl.cdiv(batch, bt)

    flops = 2 * batch * (IN_FEATURES * H1 + H1 * H2 + H2 * OUT_FEATURES)
    bytes_accessed = (PARAM_ROWS * PARAM_COLS * 4
                      + batch * IN_FEATURES * 4
                      + batch * OUT_FEATURES * 4)

    return pl.pallas_call(
        mlp_kernel,
        out_shape=jax.ShapeDtypeStruct((batch, OUT_FEATURES), jnp.float32),
        grid=(num_tiles,),
        in_specs=[
            # Single packed parameter slab, resident across all batch tiles.
            pl.BlockSpec((PARAM_ROWS, PARAM_COLS), lambda i: (0, 0)),
            # Batch tile of activations in natural [batch, features] layout.
            pl.BlockSpec((bt, IN_FEATURES), lambda i: (i, 0)),
        ],
        out_specs=pl.BlockSpec((bt, OUT_FEATURES), lambda i: (i, 0)),
        compiler_params=pltpu.CompilerParams(
            dimension_semantics=("parallel",)),
        cost_estimate=pl.CostEstimate(
            flops=flops, transcendentals=0, bytes_accessed=bytes_accessed),
    )(packed_params, x.astype(jnp.float32))


def init_params(key):
    # Mimics nn.Linear default init (uniform +/- 1/sqrt(fan_in)); PyTorch layout.
    def linear(k, fan_in, fan_out):
        kw, kb = jax.random.split(k)
        bound = 1.0 / jnp.sqrt(fan_in)
        w = jax.random.uniform(kw, (fan_out, fan_in), jnp.float32, -bound, bound)
        b = jax.random.uniform(kb, (fan_out,), jnp.float32, -bound, bound)
        return w, b

    k1, k2, k3 = jax.random.split(key, 3)
    w1, b1 = linear(k1, IN_FEATURES, H1)
    w2, b2 = linear(k2, H1, H2)
    w3, b3 = linear(k3, H2, OUT_FEATURES)
    return w1, b1, w2, b2, w3, b3


def reference_forward(x, params):
    w1, b1, w2, b2, w3, b3 = params
    h = jnp.maximum(x @ w1.T + b1, 0.0)
    h = jnp.maximum(h @ w2.T + b2, 0.0)
    # The original PyTorch Net applies F.relu after fc3 as well.
    return jnp.maximum(h @ w3.T + b3, 0.0)


if __name__ == "__main__":
    key = jax.random.PRNGKey(0)
    kx, kx2, kp = jax.random.split(key, 3)
    params = init_params(kp)
    packed = pack_params(params)

    # Small batch (single exact-sized grid tile).
    batch = 8
    x = jax.random.normal(kx, (batch, IN_FEATURES), jnp.float32)
    out = jax.block_until_ready(mlp_forward(x, packed))
    ref = reference_forward(x, params)
    assert out.shape == (batch, OUT_FEATURES)
    assert jnp.allclose(out, ref, atol=1e-5, rtol=1e-5)

    # Larger batch.
    batch2 = 200
    x2 = jax.random.normal(kx2, (batch2, IN_FEATURES), jnp.float32)
    out2 = jax.block_until_ready(mlp_forward(x2, packed))
    ref2 = reference_forward(x2, params)
    assert out2.shape == (batch2, OUT_FEATURES)
    assert jnp.allclose(out2, ref2, atol=1e-5, rtol=1e-5)

    print("KERNEL_OK")
</pallas_src>

<mosaic_0001>
module attributes {stable_mosaic.version = 11 : i64} {
  func.func @mlp_kernel(%arg0: i32, %arg1: memref<64x128xf32, #tpu.memory_space<vmem>>, %arg2: memref<8x6xf32, #tpu.memory_space<vmem>>, %arg3: memref<8x6xf32, #tpu.memory_space<vmem>>) attributes {dimension_semantics = [#tpu.dimension_semantics<parallel>], iteration_bounds = array<i64: 1>, scalar_prefetch = 0 : i64, scratch_operands = 0 : i64, tpu.core_type = #tpu.core_type<tc>, window_params = [{pipeline_mode = #tpu.pipeline_mode<synchronous>, transform_indices = @transform_0, window_bounds = array<i64: 64, 128>}, {transform_indices = @transform_1, window_bounds = array<i64: 8, 6>}, {transform_indices = @transform_2, window_bounds = array<i64: 8, 6>}]} {
    %c0 = arith.constant 0 : index
    %c0_0 = arith.constant 0 : index
    %0 = vector.load %arg2[%c0, %c0_0] : memref<8x6xf32, #tpu.memory_space<vmem>>, vector<8x6xf32>
    %c0_1 = arith.constant 0 : index
    %c0_2 = arith.constant 0 : index
    %1 = vector.load %arg1[%c0_1, %c0_2] : memref<64x128xf32, #tpu.memory_space<vmem>>, vector<6x32xf32>
    %c56 = arith.constant 56 : index
    %c0_3 = arith.constant 0 : index
    %2 = vector.load %arg1[%c56, %c0_3] : memref<64x128xf32, #tpu.memory_space<vmem>>, vector<1x32xf32>
    %cst = arith.constant dense<0.000000e+00> : vector<8x32xf32>
    %3 = tpu.matmul %0, %1, %cst {dimension_numbers = #tpu.dot_dimension_numbers<[1], [0], [0], [1], [0, 0, 1, 1], [], []>} : vector<8x6xf32>, vector<6x32xf32>, vector<8x32xf32> -> vector<8x32xf32>
    %4 = vector.broadcast %2 : vector<1x32xf32> to vector<8x32xf32>
    %5 = arith.addf %3, %4 : vector<8x32xf32>
    %cst_4 = arith.constant 0.000000e+00 : f32
    %6 = vector.broadcast %cst_4 : f32 to vector<8x32xf32>
    %7 = arith.maximumf %5, %6 : vector<8x32xf32>
    %c8 = arith.constant 8 : index
    %c0_5 = arith.constant 0 : index
    %8 = vector.load %arg1[%c8, %c0_5] : memref<64x128xf32, #tpu.memory_space<vmem>>, vector<32x16xf32>
    %c57 = arith.constant 57 : index
    %c0_6 = arith.constant 0 : index
    %9 = vector.load %arg1[%c57, %c0_6] : memref<64x128xf32, #tpu.memory_space<vmem>>, vector<1x16xf32>
    %cst_7 = arith.constant dense<0.000000e+00> : vector<8x16xf32>
    %10 = tpu.matmul %7, %8, %cst_7 {dimension_numbers = #tpu.dot_dimension_numbers<[1], [0], [0], [1], [0, 0, 1, 1], [], []>} : vector<8x32xf32>, vector<32x16xf32>, vector<8x16xf32> -> vector<8x16xf32>
    %11 = vector.broadcast %9 : vector<1x16xf32> to vector<8x16xf32>
    %12 = arith.addf %10, %11 : vector<8x16xf32>
    %cst_8 = arith.constant 0.000000e+00 : f32
    %13 = vector.broadcast %cst_8 : f32 to vector<8x16xf32>
    %14 = arith.maximumf %12, %13 : vector<8x16xf32>
    %c40 = arith.constant 40 : index
    %c0_9 = arith.constant 0 : index
    %15 = vector.load %arg1[%c40, %c0_9] : memref<64x128xf32, #tpu.memory_space<vmem>>, vector<16x6xf32>
    %c58 = arith.constant 58 : index
    %c0_10 = arith.constant 0 : index
    %16 = vector.load %arg1[%c58, %c0_10] : memref<64x128xf32, #tpu.memory_space<vmem>>, vector<1x6xf32>
    %cst_11 = arith.constant dense<0.000000e+00> : vector<8x6xf32>
    %17 = tpu.matmul %14, %15, %cst_11 {dimension_numbers = #tpu.dot_dimension_numbers<[1], [0], [0], [1], [0, 0, 1, 1], [], []>} : vector<8x16xf32>, vector<16x6xf32>, vector<8x6xf32> -> vector<8x6xf32>
    %18 = vector.broadcast %16 : vector<1x6xf32> to vector<8x6xf32>
    %19 = arith.addf %17, %18 : vector<8x6xf32>
    %cst_12 = arith.constant 0.000000e+00 : f32
    %20 = vector.broadcast %cst_12 : f32 to vector<8x6xf32>
    %21 = arith.maximumf %19, %20 : vector<8x6xf32>
    %c0_13 = arith.constant 0 : index
    %c0_14 = arith.constant 0 : index
    %22 = vector.load %arg3[%c0_13, %c0_14] : memref<8x6xf32, #tpu.memory_space<vmem>>, vector<8x6xf32>
    tpu.vector_store %arg3[%c0_13, %c0_14], %21 {strides = array<i32>} : memref<8x6xf32, #tpu.memory_space<vmem>>, vector<8x6xf32>,
    return
  }
  func.func @transform_0(%arg0: i32) -> (i32, i32) {
    %c0_i32 = arith.constant 0 : i32
    %c0_i32_0 = arith.constant 0 : i32
    %c0_i32_1 = arith.constant 0 : i32
    return %c0_i32, %c0_i32_0 : i32, i32
  }
  func.func @transform_1(%arg0: i32) -> (i32, i32) {
    %c0_i32 = arith.constant 0 : i32
    %c0_i32_0 = arith.constant 0 : i32
    return %arg0, %c0_i32 : i32, i32
  }
  func.func @transform_2(%arg0: i32) -> (i32, i32) {
    %c0_i32 = arith.constant 0 : i32
    %c0_i32_0 = arith.constant 0 : i32
    return %arg0, %c0_i32 : i32, i32
  }
}

</mosaic_0001>

<llo_original>
// kernel: tpu_custom_call.1
$region0: #{tpu_custom_call.1}
  #allocation0 [shape = 'u32[]', space=smem, size = 0x4, offset = 0x4, fixed_abs, tag = 'smem constant byte address 0x4 - core index']
  #allocation1 [shape = 'u32[144,128]{1,0:T(1,128)}', space=vmem, size = 0x12000, scoped, tag = 'internal scratch']
  %s0 = inlined_call_operand.hbm [shape: f32[64,128], index: 0, kind: input, shape index: {}]
  %s1 = inlined_call_operand.hbm [shape: f32[8,6], index: 1, kind: input, shape index: {}]
  %s2 = inlined_call_operand.hbm [shape: f32[8,6], index: 2, kind: output, shape index: {}]
  %s3 = sld [smem:[#allocation0]]
  $region26: #{tpu_custom_call.1} parent=0
    _
  %s5 = ssub.s32 1, %s3
  %s6 = scalar_select 0, %s5, %s3
  $region1: #{tpu_custom_call.1} parent=0
    #allocation2 [shape = 'u8[32768]{0}', space=vmem, size = 0x8000, scoped, tag = 'input window, operand 0, single buffered']
    #allocation3 [shape = 's32[1]{0}', space=sflag, size = 0x4, scoped, tag = 'scoped memory for tpu_custom_call.1']
    #allocation4 [shape = 's32[1]{0}', space=sflag, size = 0x4, scoped, tag = 'scoped memory for tpu_custom_call.1']
    #allocation5 [shape = 'u8[4096]{0}', space=vmem, size = 0x1000, scoped, tag = 'input window, operand 1, single buffered']
    #allocation6 [shape = 's32[1]{0}', space=sflag, size = 0x4, scoped, tag = 'scoped memory for tpu_custom_call.1']
    #allocation7 [shape = 'u8[4096]{0}', space=vmem, size = 0x1000, scoped, tag = 'output window, operand 0, single buffered']
    %7 = vsyncpa [#allocation3], 0
    %8 = vsyncpa [#allocation6], 0
    %9 = vsyncpa [#allocation4], 0
    // Predicated region
    $region2: #{tpu_custom_call.1} parent=1 // pred_check
      _
    $region3: #{tpu_custom_call.1} parent=1 // pred_check_branch
      %11 = sbr.rel (0) target = $region5
    $region4: #{tpu_custom_call.1} parent=1 // pred_region
      %s13 = ssub.s32 1024, 1024
      %14 = vsyncadd [#allocation3], %s13
      %s15 = sshll.u32 [#allocation2], 4
      %s16 = int_to_ptr.vmem [resolvable:$true] %s15
      %21 = dma.hbm_to_vmem [thread:$0]  %s0, 1024, %s16, [#allocation3], 128, 128, 8
    $region5: #{tpu_custom_call.1} parent=1 // pred_fallthru
      _
    // Predicated region
    $region6: #{tpu_custom_call.1} parent=1 // pred_check
      _
    $region7: #{tpu_custom_call.1} parent=1 // pred_check_branch
      %23 = sbr.rel (0) target = $region9
    $region8: #{tpu_custom_call.1} parent=1 // pred_region
      %s25 = ssub.s32 128, 128
      %26 = vsyncadd [#allocation6], %s25
      %s28 = sshll.u32 [#allocation5], 4
      %s29 = int_to_ptr.vmem [resolvable:$true] %s28
      %31 = dma.hbm_to_vmem [thread:$0]  %s1, 128, %s29, [#allocation6]
    $region9: #{tpu_custom_call.1} parent=1 // pred_fallthru
      _
    // Predicated region
    $region10: #{tpu_custom_call.1} parent=1 // pred_check
      _
    $region11: #{tpu_custom_call.1} parent=1 // pred_check_branch
      %33 = sbr.rel (0) target = $region13
    $region12: #{tpu_custom_call.1} parent=1 // pred_region
      %34 = dma.done [#allocation3], 1024
    $region13: #{tpu_custom_call.1} parent=1 // pred_fallthru
      _
    // Predicated region
    $region14: #{tpu_custom_call.1} parent=1 // pred_check
      _
    $region15: #{tpu_custom_call.1} parent=1 // pred_check_branch
      %36 = sbr.rel (0) target = $region17
    $region16: #{tpu_custom_call.1} parent=1 // pred_region
      %37 = dma.done [#allocation6], 128
    $region17: #{tpu_custom_call.1} parent=1 // pred_fallthru
      _
    %v38 = vld [vmem:[#allocation5] sm:$0xff]
    %v39 = vld [vmem:[#allocation2] sm:$0x3f]
    %v40 = vld [vmem:[#allocation2 + $0x38] sm:$0x1]
    %v41 = vlaneseq
    %v42 = vshrl.u32 %v41, 7
    %v43 = vsub.s32 0, %v42
    %v44 = vrot.slane %v40, %v43
    %vm45 = vcmask 48128
    %v47 = vsel %vm45, %v38, 0
    %vm49 = vcmask 1045504
    %v51 = vsel %vm49, %v39, 0
    %53 = vmatprep.subr.mxu0 0.0
    %54 = vmatpush1.msra.mxu0 0.0
    %55 = vmatprep.subr.mxu0 0.0
    %56 = vmatpush1.msra.mxu0 0.0
    %57 = vmatprep.subr.mxu0 0.0
    %58 = vmatpush1.msra.mxu0 0.0
    %59 = vmatprep.subr.mxu0 0.0
    %60 = vmatpush1.msra.mxu0 0.0
    %61 = vmatprep.subr.mxu0 0.0
    %62 = vmatpush1.msra.mxu0 0.0
    %63 = vmatprep.subr.mxu0 0.0
    %64 = vmatpush1.msra.mxu0 0.0
    %65 = vmatprep.subr.mxu0 0.0
    %66 = vmatpush1.msra.mxu0 0.0
    %67 = vmatprep.subr.mxu0 0.0
    %68 = vmatpush1.msra.mxu0 0.0
    %69 = vmatprep.subr.mxu0 0.0
    %70 = vmatpush1.msra.mxu0 0.0
    %71 = vmatprep.subr.mxu0 0.0
    %72 = vmatpush1.msra.mxu0 0.0
    %73 = vmatprep.subr.mxu0 0.0
    %74 = vmatpush1.msra.mxu0 0.0
    %75 = vmatprep.subr.mxu0 0.0
    %76 = vmatpush1.msra.mxu0 0.0
    %77 = vmatprep.subr.mxu0 0.0
    %78 = vmatpush1.msra.mxu0 0.0
    %79 = vmatprep.subr.mxu0 0.0
    %80 = vmatpush1.msra.mxu0 0.0
    %81 = vmatprep.subr.mxu0 0.0
    %82 = vmatpush1.msra.mxu0 0.0
    %83 = vmatprep.subr.mxu0 0.0
    %84 = vmatpush1.msra.mxu0 %v51
    %85 = vmatprep.subr.mxu0 0.0
    %86 = vmatpush2.msra.mxu0 0.0
    %87 = vmatprep.subr.mxu0 0.0
    %88 = vmatpush2.msra.mxu0 0.0
    %89 = vmatprep.subr.mxu0 0.0
    %90 = vmatpush2.msra.mxu0 0.0
    %91 = vmatprep.subr.mxu0 0.0
    %92 = vmatpush2.msra.mxu0 0.0
    %93 = vmatprep.subr.mxu0 0.0
    %94 = vmatpush2.msra.mxu0 0.0
    %95 = vmatprep.subr.mxu0 0.0
    %96 = vmatpush2.msra.mxu0 0.0
    %97 = vmatprep.subr.mxu0 0.0
    %98 = vmatpush2.msra.mxu0 0.0
    %99 = vmatprep.subr.mxu0 0.0
    %100 = vmatpush2.msra.mxu0 0.0
    %101 = vmatprep.subr.mxu0 0.0
    %102 = vmatpush2.msra.mxu0 0.0
    %103 = vmatprep.subr.mxu0 0.0
    %104 = vmatpush2.msra.mxu0 0.0
    %105 = vmatprep.subr.mxu0 0.0
    %106 = vmatpush2.msra.mxu0 0.0
    %107 = vmatprep.subr.mxu0 0.0
    %108 = vmatpush2.msra.mxu0 0.0
    %109 = vmatprep.subr.mxu0 0.0
    %110 = vmatpush2.msra.mxu0 0.0
    %111 = vmatprep.subr.mxu0 0.0
    %112 = vmatpush2.msra.mxu0 0.0
    %113 = vmatprep.subr.mxu0 0.0
    %114 = vmatpush2.msra.mxu0 0.0
    %115 = vmatprep.subr.mxu0 0.0
    %116 = vmatpush2.msra.mxu0 0.0
    %117 = vmatprep.mubr.f32.mxu0 0.0
    %118 = vmatmul.mubr.f32.gmra.mxu0 %v47
    %v119 = vpop.f32.mrf.mxu0
    %v120 = vadd.f32 %v44, %v119
    %v121 = vpop.f32.mrf.mxu0
    %122 = vdwg.mxu0
    %v123 = vmax.f32 %v120, 0.0
    %v124 = vld [vmem:[#allocation2 + $0x8] sm:$0xff]
    %v125 = vld [vmem:[#allocation2 + $0x10] sm:$0xff]
    %v126 = vld [vmem:[#allocation2 + $0x18] sm:$0xff]
    %v127 = vld [vmem:[#allocation2 + $0x20] sm:$0xff]
    %v128 = vld [vmem:[#allocation2 + $0x39] sm:$0x1]
    %v129 = vlaneseq
    %v130 = vshrl.u32 %v129, 7
    %v131 = vsub.s32 0, %v130
    %v132 = vrot.slane %v128, %v131
    %vm133 = vcmask 261120
    %v135 = vsel %vm133, %v123, 0
    %137 = vmatprep.subr.mxu0 0.0
    %138 = vmatpush1.msra.mxu0 0.0
    %139 = vmatprep.subr.mxu0 0.0
    %140 = vmatpush1.msra.mxu0 0.0
    %141 = vmatprep.subr.mxu0 0.0
    %142 = vmatpush1.msra.mxu0 0.0
    %143 = vmatprep.subr.mxu0 0.0
    %144 = vmatpush1.msra.mxu0 0.0
    %145 = vmatprep.subr.mxu0 0.0
    %146 = vmatpush1.msra.mxu0 0.0
    %147 = vmatprep.subr.mxu0 0.0
    %148 = vmatpush1.msra.mxu0 0.0
    %149 = vmatprep.subr.mxu0 0.0
    %150 = vmatpush1.msra.mxu0 0.0
    %151 = vmatprep.subr.mxu0 0.0
    %152 = vmatpush1.msra.mxu0 0.0
    %153 = vmatprep.subr.mxu0 0.0
    %154 = vmatpush1.msra.mxu0 0.0
    %155 = vmatprep.subr.mxu0 0.0
    %156 = vmatpush1.msra.mxu0 0.0
    %157 = vmatprep.subr.mxu0 0.0
    %158 = vmatpush1.msra.mxu0 0.0
    %159 = vmatprep.subr.mxu0 0.0
    %160 = vmatpush1.msra.mxu0 0.0
    %161 = vmatprep.subr.mxu0 0.0
    %162 = vmatpush1.msra.mxu0 %v127
    %163 = vmatprep.subr.mxu0 0.0
    %164 = vmatpush1.msra.mxu0 %v126
    %165 = vmatprep.subr.mxu0 0.0
    %166 = vmatpush1.msra.mxu0 %v125
    %167 = vmatprep.subr.mxu0 0.0
    %168 = vmatpush1.msra.mxu0 %v124
    %169 = vmatprep.subr.mxu0 0.0
    %170 = vmatpush2.msra.mxu0 0.0
    %171 = vmatprep.subr.mxu0 0.0
    %172 = vmatpush2.msra.mxu0 0.0
    %173 = vmatprep.subr.mxu0 0.0
    %174 = vmatpush2.msra.mxu0 0.0
    %175 = vmatprep.subr.mxu0 0.0
    %176 = vmatpush2.msra.mxu0 0.0
    %177 = vmatprep.subr.mxu0 0.0
    %178 = vmatpush2.msra.mxu0 0.0
    %179 = vmatprep.subr.mxu0 0.0
    %180 = vmatpush2.msra.mxu0 0.0
    %181 = vmatprep.subr.mxu0 0.0
    %182 = vmatpush2.msra.mxu0 0.0
    %183 = vmatprep.subr.mxu0 0.0
    %184 = vmatpush2.msra.mxu0 0.0
    %185 = vmatprep.subr.mxu0 0.0
    %186 = vmatpush2.msra.mxu0 0.0
    %187 = vmatprep.subr.mxu0 0.0
    %188 = vmatpush2.msra.mxu0 0.0
    %189 = vmatprep.subr.mxu0 0.0
    %190 = vmatpush2.msra.mxu0 0.0
    %191 = vmatprep.subr.mxu0 0.0
    %192 = vmatpush2.msra.mxu0 0.0
    %193 = vmatprep.subr.mxu0 0.0
    %194 = vmatpush2.msra.mxu0 0.0
    %195 = vmatprep.subr.mxu0 0.0
    %196 = vmatpush2.msra.mxu0 0.0
    %197 = vmatprep.subr.mxu0 0.0
    %198 = vmatpush2.msra.mxu0 0.0
    %199 = vmatprep.subr.mxu0 0.0
    %200 = vmatpush2.msra.mxu0 0.0
    %201 = vmatprep.mubr.f32.mxu0 0.0
    %202 = vmatmul.mubr.f32.gmra.mxu0 %v135
    %v203 = vpop.f32.mrf.mxu0
    %v204 = vadd.f32 %v132, %v203
    %v205 = vpop.f32.mrf.mxu0
    %206 = vdwg.mxu0
    %v207 = vmax.f32 %v204, 0.0
    %v208 = vld [vmem:[#allocation2 + $0x28] sm:$0xff]
    %v209 = vld [vmem:[#allocation2 + $0x30] sm:$0xff]
    %v210 = vld [vmem:[#allocation2 + $0x3a] sm:$0x1]
    %v211 = vlaneseq
    %v212 = vshrl.u32 %v211, 7
    %v213 = vsub.s32 0, %v212
    %v214 = vrot.slane %v210, %v213
    %vm215 = vcmask 130048
    %v217 = vsel %vm215, %v207, 0
    %219 = vmatprep.subr.mxu0 0.0
    %220 = vmatpush1.msra.mxu0 0.0
    %221 = vmatprep.subr.mxu0 0.0
    %222 = vmatpush1.msra.mxu0 0.0
    %223 = vmatprep.subr.mxu0 0.0
    %224 = vmatpush1.msra.mxu0 0.0
    %225 = vmatprep.subr.mxu0 0.0
    %226 = vmatpush1.msra.mxu0 0.0
    %227 = vmatprep.subr.mxu0 0.0
    %228 = vmatpush1.msra.mxu0 0.0
    %229 = vmatprep.subr.mxu0 0.0
    %230 = vmatpush1.msra.mxu0 0.0
    %231 = vmatprep.subr.mxu0 0.0
    %232 = vmatpush1.msra.mxu0 0.0
    %233 = vmatprep.subr.mxu0 0.0
    %234 = vmatpush1.msra.mxu0 0.0
    %235 = vmatprep.subr.mxu0 0.0
    %236 = vmatpush1.msra.mxu0 0.0
    %237 = vmatprep.subr.mxu0 0.0
    %238 = vmatpush1.msra.mxu0 0.0
    %239 = vmatprep.subr.mxu0 0.0
    %240 = vmatpush1.msra.mxu0 0.0
    %241 = vmatprep.subr.mxu0 0.0
    %242 = vmatpush1.msra.mxu0 0.0
    %243 = vmatprep.subr.mxu0 0.0
    %244 = vmatpush1.msra.mxu0 0.0
    %245 = vmatprep.subr.mxu0 0.0
    %246 = vmatpush1.msra.mxu0 0.0
    %247 = vmatprep.subr.mxu0 0.0
    %248 = vmatpush1.msra.mxu0 %v209
    %249 = vmatprep.subr.mxu0 0.0
    %250 = vmatpush1.msra.mxu0 %v208
    %251 = vmatprep.subr.mxu0 0.0
    %252 = vmatpush2.msra.mxu0 0.0
    %253 = vmatprep.subr.mxu0 0.0
    %254 = vmatpush2.msra.mxu0 0.0
    %255 = vmatprep.subr.mxu0 0.0
    %256 = vmatpush2.msra.mxu0 0.0
    %257 = vmatprep.subr.mxu0 0.0
    %258 = vmatpush2.msra.mxu0 0.0
    %259 = vmatprep.subr.mxu0 0.0
    %260 = vmatpush2.msra.mxu0 0.0
    %261 = vmatprep.subr.mxu0 0.0
    %262 = vmatpush2.msra.mxu0 0.0
    %263 = vmatprep.subr.mxu0 0.0
    %264 = vmatpush2.msra.mxu0 0.0
    %265 = vmatprep.subr.mxu0 0.0
    %266 = vmatpush2.msra.mxu0 0.0
    %267 = vmatprep.subr.mxu0 0.0
    %268 = vmatpush2.msra.mxu0 0.0
    %269 = vmatprep.subr.mxu0 0.0
    %270 = vmatpush2.msra.mxu0 0.0
    %271 = vmatprep.subr.mxu0 0.0
    %272 = vmatpush2.msra.mxu0 0.0
    %273 = vmatprep.subr.mxu0 0.0
    %274 = vmatpush2.msra.mxu0 0.0
    %275 = vmatprep.subr.mxu0 0.0
    %276 = vmatpush2.msra.mxu0 0.0
    %277 = vmatprep.subr.mxu0 0.0
    %278 = vmatpush2.msra.mxu0 0.0
    %279 = vmatprep.subr.mxu0 0.0
    %280 = vmatpush2.msra.mxu0 0.0
    %281 = vmatprep.subr.mxu0 0.0
    %282 = vmatpush2.msra.mxu0 0.0
    %283 = vmatprep.mubr.f32.mxu0 0.0
    %284 = vmatmul.mubr.f32.gmra.mxu0 %v217
    %v285 = vpop.f32.mrf.mxu0
    %v286 = vadd.f32 %v214, %v285
    %v287 = vpop.f32.mrf.mxu0
    %288 = vdwg.mxu0
    %v289 = vmax.f32 %v286, 0.0
    %290 = vst.msk [vmem:[#allocation7] sm:$0xff] %vm45, %v289
    // Predicated region
    $region18: #{tpu_custom_call.1} parent=1 // pred_check
      _
    $region19: #{tpu_custom_call.1} parent=1 // pred_check_branch
      %292 = sbr.rel (0) target = $region21
    $region20: #{tpu_custom_call.1} parent=1 // pred_region
      %s294 = ssub.s32 128, 128
      %295 = vsyncadd [#allocation4], %s294
      %s297 = sshll.u32 [#allocation7], 4
      %s298 = int_to_ptr.vmem [resolvable:$true] %s297
      %300 = dma.vmem_to_hbm [thread:$0]  %s298, 128, %s2, [#allocation4]
    $region21: #{tpu_custom_call.1} parent=1 // pred_fallthru
      _
    // Predicated region
    $region22: #{tpu_custom_call.1} parent=1 // pred_check
      _
    $region23: #{tpu_custom_call.1} parent=1 // pred_check_branch
      %302 = sbr.rel (0) target = $region25
    $region24: #{tpu_custom_call.1} parent=1 // pred_region
      %303 = dma.done [#allocation4], 128
    $region25: #{tpu_custom_call.1} parent=1 // pred_fallthru
      _
    %304 = vsyncpa [#allocation3], 1
    %305 = vsyncpa [#allocation6], 1
    %306 = vsyncpa [#allocation4], 1

</llo_original>
